<compile_context>
chip_gen: v7x
topology: tpu7x:2x2x1
jax: 0.10.0
libtpu: 0.0.40
codegen_flags: <defaults>
</compile_context>

<pallas_src>
import jax
import jax.numpy as jnp
from jax.experimental import pallas as pl
from jax.experimental.pallas import tpu as pltpu


def _swish_math(x):
    # sigmoid(x) = 0.5 * tanh(0.5 * x) + 0.5  (single transcendental, avoids the
    # two-branch stable-sigmoid lowering); computed in x's dtype.
    return (jnp.tanh(x * 0.5) * 0.5 + 0.5) * x


def _swish_kernel(x_ref, o_ref):
    x = x_ref[...]
    o_ref[...] = _swish_math(x).astype(o_ref.dtype)


# Prefer wide lane-dense views: contiguous DMA rows + unmasked full-width vst.
_LANE_CANDIDATES = (1024, 512, 256, 128)
# ~4 MiB tiles: near the top of the measured mem-bound tiling curve; fewer grid
# steps amortize the ~0.35 us per-step pipeline overhead. Double-buffered
# (in + out) footprint is 4 x tile = 16 MiB, covered by the explicit VMEM limit.
_TARGET_TILE_BYTES = 4 * 1024 * 1024
_VMEM_LIMIT_BYTES = 32 * 1024 * 1024  # safe on v5e/v6e (128 MiB phys) and v7x (64 MiB phys)


def _sublane(dtype) -> int:
    # Native packed-sublane height: 8 for 4-byte, 16 for 2-byte, 32 for 1-byte dtypes.
    return max(8, 32 // jnp.dtype(dtype).itemsize)


def _swish_2d(x2d: jax.Array) -> jax.Array:
    rows, lane = x2d.shape
    itemsize = jnp.dtype(x2d.dtype).itemsize
    sub = _sublane(x2d.dtype)

    # Row tile: biggest sublane-aligned block near the target tile size.
    tile_r = max(sub, _TARGET_TILE_BYTES // (lane * itemsize))
    tile_r = (tile_r // sub) * sub

    if rows >= 2 * sub:
        # Keep at least 2 grid steps so dimension_semantics=("parallel",) can
        # shard the grid across both v7x TensorCores even for mid-sized arrays.
        half = pl.cdiv(rows, 2)
        half = ((half + sub - 1) // sub) * sub
        tile_r = min(tile_r, half)
    if tile_r >= rows:
        tile_r = rows  # block equals the full dim -> always legal, single grid step

    grid = (pl.cdiv(rows, tile_r),)
    n = rows * lane

    return pl.pallas_call(
        _swish_kernel,
        out_shape=jax.ShapeDtypeStruct((rows, lane), x2d.dtype),
        grid_spec=pl.GridSpec(
            grid=grid,
            in_specs=[pl.BlockSpec((tile_r, lane), lambda i: (i, 0))],
            out_specs=pl.BlockSpec((tile_r, lane), lambda i: (i, 0)),
        ),
        compiler_params=pltpu.CompilerParams(
            dimension_semantics=("parallel",),
            vmem_limit_bytes=_VMEM_LIMIT_BYTES,
        ),
        cost_estimate=pl.CostEstimate(
            flops=4 * n,
            transcendentals=n,
            bytes_accessed=2 * n * itemsize,
        ),
    )(x2d)


def swish(x: jax.Array) -> jax.Array:
    """Elementwise swish; accepts any shape (e.g. NCHW), returns same shape/dtype."""
    orig_shape = x.shape
    n = x.size
    if n == 0:
        return x
    x_flat = x.reshape(-1)

    # Pick a lane width that already divides the element count -> no padding at
    # all (common for conv activations where C*H*W % 128 == 0).
    for cand in _LANE_CANDIDATES:
        if n % cand == 0:
            out2d = _swish_2d(x_flat.reshape(n // cand, cand))
            return out2d.reshape(orig_shape)

    # Ragged fallback: kernel on the 128-aligned prefix, plain jnp on the short
    # tail. Avoids the pad + reshape + slice HBM round-trips of a padded launch.
    lane = 128
    n_main = (n // lane) * lane
    tail = _swish_math(x_flat[n_main:]).astype(x.dtype)
    if n_main == 0:
        return tail.reshape(orig_shape)
    main = _swish_2d(x_flat[:n_main].reshape(n_main // lane, lane)).reshape(-1)
    return jnp.concatenate([main, tail]).reshape(orig_shape)


if __name__ == "__main__":
    key = jax.random.PRNGKey(0)
    k0, k1, k2 = jax.random.split(key, 3)

    # NCHW input consistent with typical conv-net usage of Swish.
    x = jax.random.normal(k0, (2, 4, 16, 16), dtype=jnp.float32)
    y = swish(x)
    jax.block_until_ready(y)
    y_ref = jax.nn.sigmoid(x) * x
    assert y.shape == x.shape and y.dtype == x.dtype
    assert jnp.allclose(y, y_ref, atol=1e-6, rtol=1e-6)

    # Ragged-size path (exercises the aligned-prefix + jnp-tail fallback).
    x2 = jax.random.normal(k1, (2, 3, 17, 19), dtype=jnp.float32)
    y2 = swish(x2)
    jax.block_until_ready(y2)
    y2_ref = jax.nn.sigmoid(x2) * x2
    assert y2.shape == x2.shape and y2.dtype == x2.dtype
    assert jnp.allclose(y2, y2_ref, atol=1e-6, rtol=1e-6)

    # bf16 path: compute stays in bf16 (no f32 upcast on v6e/v7x).
    x3 = jax.random.normal(k2, (2, 8, 128), dtype=jnp.bfloat16)
    y3 = swish(x3)
    jax.block_until_ready(y3)
    x3_f32 = x3.astype(jnp.float32)
    y3_ref = jax.nn.sigmoid(x3_f32) * x3_f32
    assert y3.shape == x3.shape and y3.dtype == x3.dtype
    assert jnp.allclose(y3.astype(jnp.float32), y3_ref, atol=2e-2, rtol=2e-2)

    print("KERNEL_OK")
</pallas_src>

<mosaic_0001>
module attributes {stable_mosaic.version = 11 : i64} {
  func.func @_swish_kernel(%arg0: i32, %arg1: memref<2x1024xf32, #tpu.memory_space<vmem>>, %arg2: memref<2x1024xf32, #tpu.memory_space<vmem>>) attributes {dimension_semantics = [#tpu.dimension_semantics<parallel>], iteration_bounds = array<i64: 1>, scalar_prefetch = 0 : i64, scratch_operands = 0 : i64, tpu.core_type = #tpu.core_type<tc>, window_params = [{transform_indices = @transform_0, window_bounds = array<i64: 2, 1024>}, {transform_indices = @transform_1, window_bounds = array<i64: 2, 1024>}]} {
    %c0 = arith.constant 0 : index
    %c0_0 = arith.constant 0 : index
    %0 = vector.load %arg1[%c0, %c0_0] : memref<2x1024xf32, #tpu.memory_space<vmem>>, vector<2x1024xf32>
    %cst = arith.constant 5.000000e-01 : f32
    %1 = vector.broadcast %cst : f32 to vector<2x1024xf32>
    %2 = arith.mulf %0, %1 : vector<2x1024xf32>
    %3 = math.tanh %2 : vector<2x1024xf32>
    %cst_1 = arith.constant 5.000000e-01 : f32
    %4 = vector.broadcast %cst_1 : f32 to vector<2x1024xf32>
    %5 = arith.mulf %3, %4 : vector<2x1024xf32>
    %cst_2 = arith.constant 5.000000e-01 : f32
    %6 = vector.broadcast %cst_2 : f32 to vector<2x1024xf32>
    %7 = arith.addf %5, %6 : vector<2x1024xf32>
    %8 = arith.mulf %7, %0 : vector<2x1024xf32>
    %c0_3 = arith.constant 0 : index
    %c0_4 = arith.constant 0 : index
    %9 = vector.load %arg2[%c0_3, %c0_4] : memref<2x1024xf32, #tpu.memory_space<vmem>>, vector<2x1024xf32>
    tpu.vector_store %arg2[%c0_3, %c0_4], %8 {strides = array<i32>} : memref<2x1024xf32, #tpu.memory_space<vmem>>, vector<2x1024xf32>,
    return
  }
  func.func @transform_0(%arg0: i32) -> (i32, i32) {
    %c0_i32 = arith.constant 0 : i32
    %c0_i32_0 = arith.constant 0 : i32
    return %arg0, %c0_i32 : i32, i32
  }
  func.func @transform_1(%arg0: i32) -> (i32, i32) {
    %c0_i32 = arith.constant 0 : i32
    %c0_i32_0 = arith.constant 0 : i32
    return %arg0, %c0_i32 : i32, i32
  }
}

</mosaic_0001>

<llo_original>
// kernel: tpu_custom_call.1
$region0: #{tpu_custom_call.1}
  #allocation0 [shape = 'u32[]', space=smem, size = 0x4, offset = 0x4, fixed_abs, tag = 'smem constant byte address 0x4 - core index']
  #allocation1 [shape = 'u32[144,128]{1,0:T(1,128)}', space=vmem, size = 0x12000, scoped, tag = 'internal scratch']
  %s0 = inlined_call_operand.hbm [shape: f32[2,1024], index: 0, kind: input, shape index: {}]
  %s1 = inlined_call_operand.hbm [shape: f32[2,1024], index: 1, kind: output, shape index: {}]
  %s2 = sld [smem:[#allocation0]]
  $region18: #{tpu_custom_call.1} parent=0
    _
  %s4 = ssub.s32 1, %s2
  %s5 = scalar_select 0, %s4, %s2
  $region1: #{tpu_custom_call.1} parent=0
    #allocation2 [shape = 'u8[8192]{0}', space=vmem, size = 0x2000, scoped, tag = 'input window, operand 0, single buffered']
    #allocation3 [shape = 's32[1]{0}', space=sflag, size = 0x4, scoped, tag = 'scoped memory for tpu_custom_call.1']
    #allocation4 [shape = 's32[1]{0}', space=sflag, size = 0x4, scoped, tag = 'scoped memory for tpu_custom_call.1']
    #allocation5 [shape = 'u8[8192]{0}', space=vmem, size = 0x2000, scoped, tag = 'output window, operand 0, single buffered']
    %6 = vsyncpa [#allocation3], 0
    %7 = vsyncpa [#allocation4], 0
    // Predicated region
    $region2: #{tpu_custom_call.1} parent=1 // pred_check
      _
    $region3: #{tpu_custom_call.1} parent=1 // pred_check_branch
      %9 = sbr.rel (0) target = $region5
    $region4: #{tpu_custom_call.1} parent=1 // pred_region
      %s11 = ssub.s32 256, 256
      %12 = vsyncadd [#allocation3], %s11
      %s14 = sshll.u32 [#allocation2], 4
      %s15 = int_to_ptr.vmem [resolvable:$true] %s14
      %17 = dma.hbm_to_vmem [thread:$0]  %s0, 256, %s15, [#allocation3]
    $region5: #{tpu_custom_call.1} parent=1 // pred_fallthru
      _
    // Predicated region
    $region6: #{tpu_custom_call.1} parent=1 // pred_check
      _
    $region7: #{tpu_custom_call.1} parent=1 // pred_check_branch
      %19 = sbr.rel (0) target = $region9
    $region8: #{tpu_custom_call.1} parent=1 // pred_region
      %20 = dma.done [#allocation3], 256
    $region9: #{tpu_custom_call.1} parent=1 // pred_fallthru
      _
    %v21 = vld [vmem:[#allocation2] sm:$0xff]
    %v22 = vld [vmem:[#allocation2 + $0x8] sm:$0xff]
    %v23 = vmul.f32 %v21, 0.5
    %v24 = vmul.f32 %v22, 0.5
    %v25 = vtanh.pop %v23
    %v26 = vtanh.pop %v24
    %v27 = vmul.f32 %v25, 0.5
    %v28 = vmul.f32 %v26, 0.5
    %v29 = vadd.f32 %v27, 0.5
    %v30 = vadd.f32 %v28, 0.5
    %v31 = vmul.f32 %v29, %v21
    %v32 = vmul.f32 %v30, %v22
    %33 = vst [vmem:[#allocation5] sm:$0xff] %v31
    %34 = vst [vmem:[#allocation5 + $0x8] sm:$0xff] %v32
    // Predicated region
    $region10: #{tpu_custom_call.1} parent=1 // pred_check
      _
    $region11: #{tpu_custom_call.1} parent=1 // pred_check_branch
      %36 = sbr.rel (0) target = $region13
    $region12: #{tpu_custom_call.1} parent=1 // pred_region
      %s38 = ssub.s32 256, 256
      %39 = vsyncadd [#allocation4], %s38
      %s41 = sshll.u32 [#allocation5], 4
      %s42 = int_to_ptr.vmem [resolvable:$true] %s41
      %44 = dma.vmem_to_hbm [thread:$0]  %s42, 256, %s1, [#allocation4]
    $region13: #{tpu_custom_call.1} parent=1 // pred_fallthru
      _
    // Predicated region
    $region14: #{tpu_custom_call.1} parent=1 // pred_check
      _
    $region15: #{tpu_custom_call.1} parent=1 // pred_check_branch
      %46 = sbr.rel (0) target = $region17
    $region16: #{tpu_custom_call.1} parent=1 // pred_region
      %47 = dma.done [#allocation4], 256
    $region17: #{tpu_custom_call.1} parent=1 // pred_fallthru
      _
    %48 = vsyncpa [#allocation3], 1
    %49 = vsyncpa [#allocation4], 1

</llo_original>
